<compile_context>
chip_gen: v7x
topology: tpu7x:2x2x1
jax: 0.10.0
libtpu: 0.0.40
codegen_flags: <defaults>
</compile_context>

<pallas_src>
import functools

import jax
import jax.numpy as jnp
from jax import lax
from jax.experimental import pallas as pl
from jax.experimental.pallas import tpu as pltpu


def _gelu_exact(x):
    # Matches torch.nn.GELU() default (erf-based, not tanh approximation).
    return 0.5 * x * (1.0 + lax.erf(x * 0.7071067811865476))


def _round_up(x, m):
    return (x + m - 1) // m * m


def xlnet_ffn_kernel(x_ref, w1_ref, b1_ref, w2_ref, b2_ref, g_ref, beta_ref,
                     o_ref, acc_ref, *, eps, activation):
    k = pl.program_id(1)
    nk = pl.num_programs(1)

    @pl.when(k == 0)
    def _():
        acc_ref[...] = jnp.zeros_like(acc_ref)

    # layer_1 chunk: (tm, d_model) @ (d_model, tk); native-dtype MXU feed,
    # f32 accumulate via preferred_element_type.
    h = jnp.dot(x_ref[...], w1_ref[...], preferred_element_type=jnp.float32)
    h = h + b1_ref[...].astype(jnp.float32)

    if activation == "relu":
        h = jnp.maximum(h, 0.0)
    else:  # 'gelu' (exact erf, matches torch.nn.GELU())
        h = _gelu_exact(h)

    # dropout -> identity (inference)

    # layer_2 partial product over this d_inner chunk, accumulated in f32.
    acc_ref[...] += jnp.dot(h.astype(w2_ref.dtype), w2_ref[...],
                            preferred_element_type=jnp.float32)

    @pl.when(k == nk - 1)
    def _():
        xf = x_ref[...].astype(jnp.float32)
        z = acc_ref[...] + b2_ref[...].astype(jnp.float32) + xf
        mean = jnp.mean(z, axis=-1, keepdims=True)
        zc = z - mean
        var = jnp.mean(zc * zc, axis=-1, keepdims=True)
        inv = lax.rsqrt(var + eps)
        out = (zc * inv * g_ref[...].astype(jnp.float32)
               + beta_ref[...].astype(jnp.float32))
        o_ref[...] = out.astype(o_ref.dtype)


def xlnet_feed_forward(x, w1, b1, w2, b2, gamma, beta, *, eps=1e-8,
                       activation="gelu", tm=None, tk=None):
    """x: (batch, seq, d_model) -> (batch, seq, d_model)."""
    batch, seq, d_model = x.shape
    d_inner = w1.shape[1]
    n = batch * seq

    # Row tile: big enough to feed the MXU; multiple of 8; rows padded.
    if tm is None:
        tm = min(256, _round_up(n, 8))
    tm = _round_up(tm, 8)
    n_pad = _round_up(n, tm)

    # d_inner chunk size (caps resident W1/W2 slabs + (tm, tk) intermediate).
    if tk is None:
        tk = min(512, _round_up(d_inner, 128))
    di_pad = _round_up(d_inner, tk)

    x2 = x.reshape(n, d_model)
    if n_pad != n:
        x2 = jnp.pad(x2, ((0, n_pad - n), (0, 0)))
    if di_pad != d_inner:
        # Zero-padded d_inner columns are exact no-ops: act(0)=0 for both
        # relu and gelu, and the matching W2 rows are zero.
        w1 = jnp.pad(w1, ((0, 0), (0, di_pad - d_inner)))
        b1 = jnp.pad(b1, ((0, di_pad - d_inner),))
        w2 = jnp.pad(w2, ((0, di_pad - d_inner), (0, 0)))

    b1_2 = b1.reshape(1, di_pad)
    b2_2 = b2.reshape(1, d_model)
    g_2 = gamma.reshape(1, d_model)
    be_2 = beta.reshape(1, d_model)

    grid = (n_pad // tm, di_pad // tk)
    kernel = functools.partial(xlnet_ffn_kernel, eps=eps, activation=activation)

    # Explicit VMEM budget: double-buffered tiles + f32 accumulator + headroom.
    isz = x.dtype.itemsize
    wsz = w1.dtype.itemsize
    vmem_bytes = (
        2 * tm * d_model * isz            # x tiles
        + 2 * d_model * tk * wsz          # W1 tiles
        + 2 * tk * d_model * wsz          # W2 tiles
        + 2 * tm * d_model * isz          # out tiles
        + tm * d_model * 4                # f32 accumulator scratch
        + 4 * (tk + 3 * d_model) * 4      # biases / gamma / beta (generous)
    )
    vmem_limit = min(int(vmem_bytes * 1.5) + (4 << 20), 56 << 20)  # v7x headroom
    vmem_limit = max(vmem_limit, 32 << 20)

    flops = 4 * n_pad * d_model * di_pad  # two matmuls
    bytes_accessed = (2 * n_pad * d_model * isz
                      + 2 * d_model * di_pad * wsz
                      + (di_pad + 3 * d_model) * 4)
    cost = pl.CostEstimate(flops=flops,
                           transcendentals=n_pad * di_pad,
                           bytes_accessed=bytes_accessed)

    out2 = pl.pallas_call(
        kernel,
        out_shape=jax.ShapeDtypeStruct((n_pad, d_model), x.dtype),
        grid_spec=pltpu.PrefetchScalarGridSpec(
            num_scalar_prefetch=0,
            grid=grid,
            in_specs=[
                pl.BlockSpec((tm, d_model), lambda i, k: (i, 0)),    # x rows
                pl.BlockSpec((d_model, tk), lambda i, k: (0, k)),    # W1 chunk
                pl.BlockSpec((1, tk), lambda i, k: (0, k)),          # b1 chunk
                pl.BlockSpec((tk, d_model), lambda i, k: (k, 0)),    # W2 chunk
                pl.BlockSpec((1, d_model), lambda i, k: (0, 0)),     # b2
                pl.BlockSpec((1, d_model), lambda i, k: (0, 0)),     # gamma
                pl.BlockSpec((1, d_model), lambda i, k: (0, 0)),     # beta
            ],
            out_specs=pl.BlockSpec((tm, d_model), lambda i, k: (i, 0)),
            scratch_shapes=[pltpu.VMEM((tm, d_model), jnp.float32)],
        ),
        compiler_params=pltpu.CompilerParams(
            dimension_semantics=("parallel", "arbitrary"),
            vmem_limit_bytes=vmem_limit),
        cost_estimate=cost,
    )(x2, w1, b1_2, w2, b2_2, g_2, be_2)

    return out2[:n].reshape(batch, seq, d_model)


def _reference(x, w1, b1, w2, b2, gamma, beta, eps=1e-8, activation="gelu"):
    xf = x.astype(jnp.float32)
    h = xf @ w1.astype(jnp.float32) + b1.astype(jnp.float32)
    h = jnp.maximum(h, 0.0) if activation == "relu" else _gelu_exact(h)
    y = h @ w2.astype(jnp.float32) + b2.astype(jnp.float32)
    z = y + xf
    mean = jnp.mean(z, axis=-1, keepdims=True)
    var = jnp.mean((z - mean) ** 2, axis=-1, keepdims=True)
    return ((z - mean) * lax.rsqrt(var + eps) * gamma.astype(jnp.float32)
            + beta.astype(jnp.float32)).astype(x.dtype)


if __name__ == "__main__":
    batch, seq = 2, 8
    d_model, d_inner = 32, 64

    key = jax.random.PRNGKey(0)
    kx, k1, k2, k3, k4 = jax.random.split(key, 5)

    # Deterministic synthetic parameters (shapes from nn.Linear / nn.LayerNorm).
    x = jax.random.normal(kx, (batch, seq, d_model), dtype=jnp.float32)
    w1 = jax.random.normal(k1, (d_model, d_inner), dtype=jnp.float32) * 0.05
    b1 = jax.random.normal(k2, (d_inner,), dtype=jnp.float32) * 0.05
    w2 = jax.random.normal(k3, (d_inner, d_model), dtype=jnp.float32) * 0.05
    b2 = jax.random.normal(k4, (d_model,), dtype=jnp.float32) * 0.05
    gamma = jnp.ones((d_model,), dtype=jnp.float32)   # LayerNorm weight init
    beta = jnp.zeros((d_model,), dtype=jnp.float32)   # LayerNorm bias init

    out = xlnet_feed_forward(x, w1, b1, w2, b2, gamma, beta)
    out = jax.block_until_ready(out)

    ref = _reference(x, w1, b1, w2, b2, gamma, beta)
    assert out.shape == (batch, seq, d_model)
    assert jnp.allclose(out, ref, atol=1e-5, rtol=1e-5), "mismatch vs reference"

    print("KERNEL_OK")
</pallas_src>

<mosaic_0001>
module attributes {stable_mosaic.version = 11 : i64} {
  func.func @xlnet_ffn_kernel(%arg0: i32, %arg1: i32, %arg2: memref<16x32xf32, #tpu.memory_space<vmem>>, %arg3: memref<32x128xf32, #tpu.memory_space<vmem>>, %arg4: memref<1x128xf32, #tpu.memory_space<vmem>>, %arg5: memref<128x32xf32, #tpu.memory_space<vmem>>, %arg6: memref<1x32xf32, #tpu.memory_space<vmem>>, %arg7: memref<1x32xf32, #tpu.memory_space<vmem>>, %arg8: memref<1x32xf32, #tpu.memory_space<vmem>>, %arg9: memref<16x32xf32, #tpu.memory_space<vmem>>, %arg10: memref<16x32xf32, #tpu.memory_space<vmem>>) attributes {dimension_semantics = [#tpu.dimension_semantics<parallel>, #tpu.dimension_semantics<arbitrary>], iteration_bounds = array<i64: 1, 1>, scalar_prefetch = 0 : i64, scratch_operands = 1 : i64, tpu.core_type = #tpu.core_type<tc>, window_params = [{transform_indices = @transform_0, window_bounds = array<i64: 16, 32>}, {transform_indices = @transform_1, window_bounds = array<i64: 32, 128>}, {transform_indices = @transform_2, window_bounds = array<i64: 1, 128>}, {transform_indices = @transform_3, window_bounds = array<i64: 128, 32>}, {pipeline_mode = #tpu.pipeline_mode<synchronous>, transform_indices = @transform_4, window_bounds = array<i64: 1, 32>}, {pipeline_mode = #tpu.pipeline_mode<synchronous>, transform_indices = @transform_5, window_bounds = array<i64: 1, 32>}, {pipeline_mode = #tpu.pipeline_mode<synchronous>, transform_indices = @transform_6, window_bounds = array<i64: 1, 32>}, {transform_indices = @transform_7, window_bounds = array<i64: 16, 32>}]} {
    %c0_i32 = arith.constant 0 : i32
    %0 = arith.cmpi eq, %arg1, %c0_i32 : i32
    %1 = arith.extui %0 : i1 to i32
    %c0_i32_0 = arith.constant 0 : i32
    %2 = arith.cmpi ne, %1, %c0_i32_0 : i32
    scf.if %2 {
      %cst_18 = arith.constant 0.000000e+00 : f32
      %25 = vector.broadcast %cst_18 : f32 to vector<16x32xf32>
      %c0_19 = arith.constant 0 : index
      %c0_20 = arith.constant 0 : index
      %26 = vector.load %arg10[%c0_19, %c0_20] : memref<16x32xf32, #tpu.memory_space<vmem>>, vector<16x32xf32>
      tpu.vector_store %arg10[%c0_19, %c0_20], %25 {strides = array<i32>} : memref<16x32xf32, #tpu.memory_space<vmem>>, vector<16x32xf32>,
    } else {
    }
    %c0 = arith.constant 0 : index
    %c0_1 = arith.constant 0 : index
    %3 = vector.load %arg2[%c0, %c0_1] : memref<16x32xf32, #tpu.memory_space<vmem>>, vector<16x32xf32>
    %c0_2 = arith.constant 0 : index
    %c0_3 = arith.constant 0 : index
    %4 = vector.load %arg3[%c0_2, %c0_3] : memref<32x128xf32, #tpu.memory_space<vmem>>, vector<32x128xf32>
    %cst = arith.constant dense<0.000000e+00> : vector<16x128xf32>
    %5 = tpu.matmul %3, %4, %cst {dimension_numbers = #tpu.dot_dimension_numbers<[1], [0], [0], [1], [0, 0, 1, 1], [], []>} : vector<16x32xf32>, vector<32x128xf32>, vector<16x128xf32> -> vector<16x128xf32>
    %c0_4 = arith.constant 0 : index
    %c0_5 = arith.constant 0 : index
    %6 = vector.load %arg4[%c0_4, %c0_5] : memref<1x128xf32, #tpu.memory_space<vmem>>, vector<1x128xf32>
    %7 = vector.broadcast %6 : vector<1x128xf32> to vector<16x128xf32>
    %8 = arith.addf %5, %7 : vector<16x128xf32>
    %cst_6 = arith.constant 5.000000e-01 : f32
    %9 = vector.broadcast %cst_6 : f32 to vector<16x128xf32>
    %10 = arith.mulf %9, %8 : vector<16x128xf32>
    %cst_7 = arith.constant 0.707106769 : f32
    %11 = vector.broadcast %cst_7 : f32 to vector<16x128xf32>
    %12 = arith.mulf %8, %11 : vector<16x128xf32>
    %13 = math.erf %12 : vector<16x128xf32>
    %cst_8 = arith.constant 1.000000e+00 : f32
    %14 = vector.broadcast %cst_8 : f32 to vector<16x128xf32>
    %15 = arith.addf %14, %13 : vector<16x128xf32>
    %16 = arith.mulf %10, %15 : vector<16x128xf32>
    %c0_9 = arith.constant 0 : index
    %c0_10 = arith.constant 0 : index
    %17 = vector.load %arg10[%c0_9, %c0_10] : memref<16x32xf32, #tpu.memory_space<vmem>>, vector<16x32xf32>
    %c0_11 = arith.constant 0 : index
    %c0_12 = arith.constant 0 : index
    %18 = vector.load %arg5[%c0_11, %c0_12] : memref<128x32xf32, #tpu.memory_space<vmem>>, vector<128x32xf32>
    %cst_13 = arith.constant dense<0.000000e+00> : vector<16x32xf32>
    %19 = tpu.matmul %16, %18, %cst_13 {dimension_numbers = #tpu.dot_dimension_numbers<[1], [0], [0], [1], [0, 0, 1, 1], [], []>} : vector<16x128xf32>, vector<128x32xf32>, vector<16x32xf32> -> vector<16x32xf32>
    %20 = arith.addf %17, %19 : vector<16x32xf32>
    %c0_14 = arith.constant 0 : index
    %c0_15 = arith.constant 0 : index
    %21 = vector.load %arg10[%c0_14, %c0_15] : memref<16x32xf32, #tpu.memory_space<vmem>>, vector<16x32xf32>
    tpu.vector_store %arg10[%c0_14, %c0_15], %20 {strides = array<i32>} : memref<16x32xf32, #tpu.memory_space<vmem>>, vector<16x32xf32>,
    %c0_i32_16 = arith.constant 0 : i32
    %22 = arith.cmpi eq, %arg1, %c0_i32_16 : i32
    %23 = arith.extui %22 : i1 to i32
    %c0_i32_17 = arith.constant 0 : i32
    %24 = arith.cmpi ne, %23, %c0_i32_17 : i32
    scf.if %24 {
      %c0_18 = arith.constant 0 : index
      %c0_19 = arith.constant 0 : index
      %25 = vector.load %arg2[%c0_18, %c0_19] : memref<16x32xf32, #tpu.memory_space<vmem>>, vector<16x32xf32>
      %c0_20 = arith.constant 0 : index
      %c0_21 = arith.constant 0 : index
      %26 = vector.load %arg10[%c0_20, %c0_21] : memref<16x32xf32, #tpu.memory_space<vmem>>, vector<16x32xf32>
      %c0_22 = arith.constant 0 : index
      %c0_23 = arith.constant 0 : index
      %27 = vector.load %arg6[%c0_22, %c0_23] : memref<1x32xf32, #tpu.memory_space<vmem>>, vector<1x32xf32>
      %28 = vector.broadcast %27 : vector<1x32xf32> to vector<16x32xf32>
      %29 = arith.addf %26, %28 : vector<16x32xf32>
      %30 = arith.addf %29, %25 : vector<16x32xf32>
      %cst_24 = arith.constant dense<0.000000e+00> : vector<16xf32>
      %31 = vector.multi_reduction <add>, %30, %cst_24 [1] : vector<16x32xf32> to vector<16xf32>
      %32 = vector.shape_cast %31 : vector<16xf32> to vector<16x1xf32>
      %cst_25 = arith.constant 3.200000e+01 : f32
      %33 = vector.broadcast %cst_25 : f32 to vector<16x1xf32>
      %34 = arith.divf %32, %33 : vector<16x1xf32>
      %35 = vector.broadcast %34 : vector<16x1xf32> to vector<16x32xf32>
      %36 = arith.subf %30, %35 : vector<16x32xf32>
      %37 = arith.mulf %36, %36 : vector<16x32xf32>
      %cst_26 = arith.constant dense<0.000000e+00> : vector<16xf32>
      %38 = vector.multi_reduction <add>, %37, %cst_26 [1] : vector<16x32xf32> to vector<16xf32>
      %39 = vector.shape_cast %38 : vector<16xf32> to vector<16x1xf32>
      %cst_27 = arith.constant 3.200000e+01 : f32
      %40 = vector.broadcast %cst_27 : f32 to vector<16x1xf32>
      %41 = arith.divf %39, %40 : vector<16x1xf32>
      %cst_28 = arith.constant 9.99999993E-9 : f32
      %42 = vector.broadcast %cst_28 : f32 to vector<16x1xf32>
      %43 = arith.addf %41, %42 : vector<16x1xf32>
      %44 = math.rsqrt %43 : vector<16x1xf32>
      %45 = vector.broadcast %44 : vector<16x1xf32> to vector<16x32xf32>
      %46 = arith.mulf %36, %45 : vector<16x32xf32>
      %c0_29 = arith.constant 0 : index
      %c0_30 = arith.constant 0 : index
      %47 = vector.load %arg7[%c0_29, %c0_30] : memref<1x32xf32, #tpu.memory_space<vmem>>, vector<1x32xf32>
      %48 = vector.broadcast %47 : vector<1x32xf32> to vector<16x32xf32>
      %49 = arith.mulf %46, %48 : vector<16x32xf32>
      %c0_31 = arith.constant 0 : index
      %c0_32 = arith.constant 0 : index
      %50 = vector.load %arg8[%c0_31, %c0_32] : memref<1x32xf32, #tpu.memory_space<vmem>>, vector<1x32xf32>
      %51 = vector.broadcast %50 : vector<1x32xf32> to vector<16x32xf32>
      %52 = arith.addf %49, %51 : vector<16x32xf32>
      %c0_33 = arith.constant 0 : index
      %c0_34 = arith.constant 0 : index
      %53 = vector.load %arg9[%c0_33, %c0_34] : memref<16x32xf32, #tpu.memory_space<vmem>>, vector<16x32xf32>
      tpu.vector_store %arg9[%c0_33, %c0_34], %52 {strides = array<i32>} : memref<16x32xf32, #tpu.memory_space<vmem>>, vector<16x32xf32>,
    } else {
    }
    return
  }
  func.func @transform_0(%arg0: i32, %arg1: i32) -> (i32, i32) {
    %c0_i32 = arith.constant 0 : i32
    %c0_i32_0 = arith.constant 0 : i32
    return %arg0, %c0_i32 : i32, i32
  }
  func.func @transform_1(%arg0: i32, %arg1: i32) -> (i32, i32) {
    %c0_i32 = arith.constant 0 : i32
    %c0_i32_0 = arith.constant 0 : i32
    return %c0_i32, %arg1 : i32, i32
  }
  func.func @transform_2(%arg0: i32, %arg1: i32) -> (i32, i32) {
    %c0_i32 = arith.constant 0 : i32
    %c0_i32_0 = arith.constant 0 : i32
    return %c0_i32, %arg1 : i32, i32
  }
  func.func @transform_3(%arg0: i32, %arg1: i32) -> (i32, i32) {
    %c0_i32 = arith.constant 0 : i32
    %c0_i32_0 = arith.constant 0 : i32
    return %arg1, %c0_i32 : i32, i32
  }
  func.func @transform_4(%arg0: i32, %arg1: i32) -> (i32, i32) {
    %c0_i32 = arith.constant 0 : i32
    %c0_i32_0 = arith.constant 0 : i32
    %c0_i32_1 = arith.constant 0 : i32
    return %c0_i32, %c0_i32_0 : i32, i32
  }
  func.func @transform_5(%arg0: i32, %arg1: i32) -> (i32, i32) {
    %c0_i32 = arith.constant 0 : i32
    %c0_i32_0 = arith.constant 0 : i32
    %c0_i32_1 = arith.constant 0 : i32
    return %c0_i32, %c0_i32_0 : i32, i32
  }
  func.func @transform_6(%arg0: i32, %arg1: i32) -> (i32, i32) {
    %c0_i32 = arith.constant 0 : i32
    %c0_i32_0 = arith.constant 0 : i32
    %c0_i32_1 = arith.constant 0 : i32
    return %c0_i32, %c0_i32_0 : i32, i32
  }
  func.func @transform_7(%arg0: i32, %arg1: i32) -> (i32, i32) {
    %c0_i32 = arith.constant 0 : i32
    %c0_i32_0 = arith.constant 0 : i32
    return %arg0, %c0_i32 : i32, i32
  }
}

</mosaic_0001>

<llo_original>
// kernel: tpu_custom_call.1
$region0: #{tpu_custom_call.1}
  #allocation0 [shape = 'u32[]', space=smem, size = 0x4, offset = 0x4, fixed_abs, tag = 'smem constant byte address 0x4 - core index']
  #allocation1 [shape = 'u32[144,128]{1,0:T(1,128)}', space=vmem, size = 0x12000, scoped, tag = 'internal scratch']
  #allocation2 [shape = 'f32[16,32]{1,0:T(8,128)}', space=vmem, size = 0x2000, scoped, tag = 'scratch operand']
  %s0 = inlined_call_operand.vmem [shape: f32[16,32], index: 0, kind: input, shape index: {}]
  %s1 = inlined_call_operand.vmem [shape: f32[32,128], index: 1, kind: input, shape index: {}]
  %s2 = inlined_call_operand.vmem [shape: f32[1,128], index: 2, kind: input, shape index: {}]
  %s3 = inlined_call_operand.vmem [shape: f32[128,32], index: 3, kind: input, shape index: {}]
  %s4 = inlined_call_operand.vmem [shape: f32[1,32], index: 4, kind: input, shape index: {}]
  %s5 = inlined_call_operand.vmem [shape: f32[1,32], index: 5, kind: input, shape index: {}]
  %s6 = inlined_call_operand.vmem [shape: f32[1,32], index: 6, kind: input, shape index: {}]
  %s7 = inlined_call_operand.hbm [shape: f32[16,32], index: 7, kind: output, shape index: {}]
  %s8 = sld [smem:[#allocation0]]
  $region46: #{tpu_custom_call.1} parent=0
    _
  %s10 = ssub.s32 1, %s8
  %s11 = scalar_select 0, %s10, %s8
  $region1: #{tpu_custom_call.1} parent=0
    #allocation3 [shape = 'u8[8192]{0}', space=vmem, size = 0x2000, scoped, tag = 'output window, operand 0, single buffered']
    #allocation4 [shape = 's32[1]{0}', space=sflag, size = 0x4, scoped, tag = 'scoped memory for tpu_custom_call.1']
    %12 = vsyncpa [#allocation4], 0
    // Predicated region
    $region2: #{tpu_custom_call.1} parent=1 // pred_check
      _
    $region3: #{tpu_custom_call.1} parent=1 // pred_check_branch
      %14 = sbr.rel (0) target = $region5
    $region4: #{tpu_custom_call.1} parent=1 // pred_region
      _
    $region5: #{tpu_custom_call.1} parent=1 // pred_fallthru
      _
    // Predicated region
    $region6: #{tpu_custom_call.1} parent=1 // pred_check
      _
    $region7: #{tpu_custom_call.1} parent=1 // pred_check_branch
      %16 = sbr.rel (0) target = $region9
    $region8: #{tpu_custom_call.1} parent=1 // pred_region
      _
    $region9: #{tpu_custom_call.1} parent=1 // pred_fallthru
      _
    // Predicated region
    $region10: #{tpu_custom_call.1} parent=1 // pred_check
      _
    $region11: #{tpu_custom_call.1} parent=1 // pred_check_branch
      %18 = sbr.rel (0) target = $region13
    $region12: #{tpu_custom_call.1} parent=1 // pred_region
      _
    $region13: #{tpu_custom_call.1} parent=1 // pred_fallthru
      _
    // Predicated region
    $region14: #{tpu_custom_call.1} parent=1 // pred_check
      _
    $region15: #{tpu_custom_call.1} parent=1 // pred_check_branch
      %20 = sbr.rel (0) target = $region17
    $region16: #{tpu_custom_call.1} parent=1 // pred_region
      _
    $region17: #{tpu_custom_call.1} parent=1 // pred_fallthru
      _
    // Predicated region
    $region18: #{tpu_custom_call.1} parent=1 // pred_check
      _
    $region19: #{tpu_custom_call.1} parent=1 // pred_check_branch
      %22 = sbr.rel (0) target = $region21
    $region20: #{tpu_custom_call.1} parent=1 // pred_region
      _
    $region21: #{tpu_custom_call.1} parent=1 // pred_fallthru
      _
    // Predicated region
    $region22: #{tpu_custom_call.1} parent=1 // pred_check
      _
    $region23: #{tpu_custom_call.1} parent=1 // pred_check_branch
      %24 = sbr.rel (0) target = $region25
    $region24: #{tpu_custom_call.1} parent=1 // pred_region
      _
    $region25: #{tpu_custom_call.1} parent=1 // pred_fallthru
      _
    // Predicated region
    $region26: #{tpu_custom_call.1} parent=1 // pred_check
      _
    $region27: #{tpu_custom_call.1} parent=1 // pred_check_branch
      %26 = sbr.rel (0) target = $region29
    $region28: #{tpu_custom_call.1} parent=1 // pred_region
      _
    $region29: #{tpu_custom_call.1} parent=1 // pred_fallthru
      _
    %p27 = scmp.eq.s32.totalorder 0, 0
    // Predicated region
    $region30: #{tpu_custom_call.1} parent=1 // pred_check
      %p28 = pneg %p27
    $region31: #{tpu_custom_call.1} parent=1 // pred_check_branch
      %30 = sbr.rel (%p28) target = $region33
    $region32: #{tpu_custom_call.1} parent=1 // pred_region
      %vm31 = vcmask 261120
      %32 = vst.msk [vmem:[#allocation2] sm:$0xff] %vm31, 0.0
      %33 = vst.msk [vmem:[#allocation2 + $0x8] sm:$0xff] %vm31, 0.0
    $region33: #{tpu_custom_call.1} parent=1 // pred_fallthru
      _
    %v34 = vld [vmem:[%s0] sm:$0xff]
    %v35 = vld [vmem:[%s0 + $0x8] sm:$0xff]
    %v36 = vld [vmem:[%s1] sm:$0xff]
    %v37 = vld [vmem:[%s1 + $0x8] sm:$0xff]
    %v38 = vld [vmem:[%s1 + $0x10] sm:$0xff]
    %v39 = vld [vmem:[%s1 + $0x18] sm:$0xff]
    %v40 = vld [vmem:[%s2] sm:$0x1]
    %v42 = vlaneseq
    %v43 = vshrl.u32 %v42, 7
    %v44 = vsub.s32 0, %v43
    %v45 = vrot.slane %v40, %v44
    %vm47 = vcmask 261120
    %v49 = vsel %vm47, %v34, 0
    %v52 = vsel %vm47, %v35, 0
    %54 = vmatprep.subr.mxu0 0.0
    %55 = vmatpush1.msra.mxu0 %v36
    %56 = vmatprep.subr.mxu0 0.0
    %57 = vmatpush1.msra.mxu0 %v37
    %58 = vmatprep.subr.mxu0 0.0
    %59 = vmatpush1.msra.mxu0 %v38
    %60 = vmatprep.subr.mxu0 0.0
    %61 = vmatpush1.msra.mxu0 %v39
    %62 = vmatprep.subr.mxu0 0.0
    %63 = vmatpush1.msra.mxu0 0.0
    %64 = vmatprep.subr.mxu0 0.0
    %65 = vmatpush1.msra.mxu0 0.0
    %66 = vmatprep.subr.mxu0 0.0
    %67 = vmatpush1.msra.mxu0 0.0
    %68 = vmatprep.subr.mxu0 0.0
    %69 = vmatpush1.msra.mxu0 0.0
    %70 = vmatprep.subr.mxu0 0.0
    %71 = vmatpush1.msra.mxu0 0.0
    %72 = vmatprep.subr.mxu0 0.0
    %73 = vmatpush1.msra.mxu0 0.0
    %74 = vmatprep.subr.mxu0 0.0
    %75 = vmatpush1.msra.mxu0 0.0
    %76 = vmatprep.subr.mxu0 0.0
    %77 = vmatpush1.msra.mxu0 0.0
    %78 = vmatprep.subr.mxu0 0.0
    %79 = vmatpush1.msra.mxu0 0.0
    %80 = vmatprep.subr.mxu0 0.0
    %81 = vmatpush1.msra.mxu0 0.0
    %82 = vmatprep.subr.mxu0 0.0
    %83 = vmatpush1.msra.mxu0 0.0
    %84 = vmatprep.subr.mxu0 0.0
    %85 = vmatpush1.msra.mxu0 0.0
    %86 = vmatprep.subr.mxu0 0.0
    %87 = vmatpush1.msra.mxu0 0.0
    %88 = vmatprep.subr.mxu0 0.0
    %89 = vmatpush1.msra.mxu0 0.0
    %90 = vmatprep.subr.mxu0 0.0
    %91 = vmatpush1.msra.mxu0 0.0
    %92 = vmatprep.subr.mxu0 0.0
    %93 = vmatpush1.msra.mxu0 0.0
    %94 = vmatprep.subr.mxu0 0.0
    %95 = vmatpush1.msra.mxu0 0.0
    %96 = vmatprep.subr.mxu0 0.0
    %97 = vmatpush1.msra.mxu0 0.0
    %98 = vmatprep.subr.mxu0 0.0
    %99 = vmatpush1.msra.mxu0 0.0
    %100 = vmatprep.subr.mxu0 0.0
    %101 = vmatpush1.msra.mxu0 0.0
    %102 = vmatprep.subr.mxu0 0.0
    %103 = vmatpush1.msra.mxu0 0.0
    %104 = vmatprep.subr.mxu0 0.0
    %105 = vmatpush1.msra.mxu0 0.0
    %106 = vmatprep.subr.mxu0 0.0
    %107 = vmatpush1.msra.mxu0 0.0
    %108 = vmatprep.subr.mxu0 0.0
    %109 = vmatpush1.msra.mxu0 0.0
    %110 = vmatprep.subr.mxu0 0.0
    %111 = vmatpush1.msra.mxu0 0.0
    %112 = vmatprep.subr.mxu0 0.0
    %113 = vmatpush1.msra.mxu0 0.0
    %114 = vmatprep.subr.mxu0 0.0
    %115 = vmatpush1.msra.mxu0 0.0
    %116 = vmatprep.subr.mxu0 0.0
    %117 = vmatpush1.msra.mxu0 0.0
    %118 = vmatprep.mubr.f32.mxu0 0.0
    %119 = vmatmul.mubr.f32.gmra.mrb[0].mxu0 %v49
    %v120 = vpop.f32.mrb[0].mxu0
    %v121 = vadd.f32 %v45, %v120
    %v122 = vpop.f32.mrb[0].mxu0
    %123 = vmatprep.mubr.f32.mxu0 0.0
    %124 = vmatmul.mubr.f32.gmra.mrb[0].mxu0 %v52
    %v125 = vpop.f32.mrb[0].mxu0
    %v126 = vadd.f32 %v45, %v125
    %v127 = vpop.f32.mrb[0].mxu0
    %128 = vdwg.mxu0
    %v129 = vmul.f32 %v121, 0.5
    %v130 = vmul.f32 %v126, 0.5
    %v131 = vmul.f32 %v121, 0.70710677
    %v132 = vmul.f32 %v126, 0.70710677
    %v133 = verf.f32.pop %v131
    %v134 = verf.f32.pop %v132
    %v135 = vadd.f32 %v133, 1.0
    %v136 = vadd.f32 %v134, 1.0
    %v137 = vmul.f32 %v129, %v135
    %v138 = vmul.f32 %v130, %v136
    %v139 = vld [vmem:[#allocation2] sm:$0xff]
    %v140 = vld [vmem:[#allocation2 + $0x8] sm:$0xff]
    %v141 = vld [vmem:[%s3] sm:$0xff]
    %v142 = vld [vmem:[%s3 + $0x8] sm:$0xff]
    %v143 = vld [vmem:[%s3 + $0x10] sm:$0xff]
    %v144 = vld [vmem:[%s3 + $0x18] sm:$0xff]
    %v145 = vld [vmem:[%s3 + $0x20] sm:$0xff]
    %v146 = vld [vmem:[%s3 + $0x28] sm:$0xff]
    %v147 = vld [vmem:[%s3 + $0x30] sm:$0xff]
    %v148 = vld [vmem:[%s3 + $0x38] sm:$0xff]
    %v149 = vld [vmem:[%s3 + $0x40] sm:$0xff]
    %v150 = vld [vmem:[%s3 + $0x48] sm:$0xff]
    %v151 = vld [vmem:[%s3 + $0x50] sm:$0xff]
    %v152 = vld [vmem:[%s3 + $0x58] sm:$0xff]
    %v153 = vld [vmem:[%s3 + $0x60] sm:$0xff]
    %v154 = vld [vmem:[%s3 + $0x68] sm:$0xff]
    %v155 = vld [vmem:[%s3 + $0x70] sm:$0xff]
    %v156 = vld [vmem:[%s3 + $0x78] sm:$0xff]
    %157 = vmatprep.subr.mxu0 0.0
    %158 = vmatpush1.msra.mxu0 %v141
    %159 = vmatprep.subr.mxu0 0.0
    %160 = vmatpush1.msra.mxu0 %v142
    %161 = vmatprep.subr.mxu0 0.0
    %162 = vmatpush1.msra.mxu0 %v143
    %163 = vmatprep.subr.mxu0 0.0
    %164 = vmatpush1.msra.mxu0 %v144
    %165 = vmatprep.subr.mxu0 0.0
    %166 = vmatpush1.msra.mxu0 %v145
    %167 = vmatprep.subr.mxu0 0.0
    %168 = vmatpush1.msra.mxu0 %v146
    %169 = vmatprep.subr.mxu0 0.0
    %170 = vmatpush1.msra.mxu0 %v147
    %171 = vmatprep.subr.mxu0 0.0
    %172 = vmatpush1.msra.mxu0 %v148
    %173 = vmatprep.subr.mxu0 0.0
    %174 = vmatpush1.msra.mxu0 %v149
    %175 = vmatprep.subr.mxu0 0.0
    %176 = vmatpush1.msra.mxu0 %v150
    %177 = vmatprep.subr.mxu0 0.0
    %178 = vmatpush1.msra.mxu0 %v151
    %179 = vmatprep.subr.mxu0 0.0
    %180 = vmatpush1.msra.mxu0 %v152
    %181 = vmatprep.subr.mxu0 0.0
    %182 = vmatpush1.msra.mxu0 %v153
    %183 = vmatprep.subr.mxu0 0.0
    %184 = vmatpush1.msra.mxu0 %v154
    %185 = vmatprep.subr.mxu0 0.0
    %186 = vmatpush1.msra.mxu0 %v155
    %187 = vmatprep.subr.mxu0 0.0
    %188 = vmatpush1.msra.mxu0 %v156
    %189 = vmatprep.subr.mxu0 0.0
    %190 = vmatpush1.msra.mxu0 0.0
    %191 = vmatprep.subr.mxu0 0.0
    %192 = vmatpush1.msra.mxu0 0.0
    %193 = vmatprep.subr.mxu0 0.0
    %194 = vmatpush1.msra.mxu0 0.0
    %195 = vmatprep.subr.mxu0 0.0
    %196 = vmatpush1.msra.mxu0 0.0
    %197 = vmatprep.subr.mxu0 0.0
    %198 = vmatpush1.msra.mxu0 0.0
    %199 = vmatprep.subr.mxu0 0.0
    %200 = vmatpush1.msra.mxu0 0.0
    %201 = vmatprep.subr.mxu0 0.0
    %202 = vmatpush1.msra.mxu0 0.0
    %203 = vmatprep.subr.mxu0 0.0
    %204 = vmatpush1.msra.mxu0 0.0
    %205 = vmatprep.subr.mxu0 0.0
    %206 = vmatpush1.msra.mxu0 0.0
    %207 = vmatprep.subr.mxu0 0.0
    %208 = vmatpush1.msra.mxu0 0.0
    %209 = vmatprep.subr.mxu0 0.0
    %210 = vmatpush1.msra.mxu0 0.0
    %211 = vmatprep.subr.mxu0 0.0
    %212 = vmatpush1.msra.mxu0 0.0
    %213 = vmatprep.subr.mxu0 0.0
    %214 = vmatpush1.msra.mxu0 0.0
    %215 = vmatprep.subr.mxu0 0.0
    %216 = vmatpush1.msra.mxu0 0.0
    %217 = vmatprep.subr.mxu0 0.0
    %218 = vmatpush1.msra.mxu0 0.0
    %219 = vmatprep.subr.mxu0 0.0
    %220 = vmatpush1.msra.mxu0 0.0
    %221 = vmatprep.mubr.f32.mxu0 0.0
    %222 = vmatmul.mubr.f32.gmra.mrb[0].mxu0 %v137
    %v223 = vpop.f32.mrb[0].mxu0
    %v224 = vadd.f32 0.0, %v223
    %v225 = vpop.f32.mrb[0].mxu0
    %226 = vmatprep.mubr.f32.mxu0 0.0
    %227 = vmatmul.mubr.f32.gmra.mrb[0].mxu0 %v138
    %v228 = vpop.f32.mrb[0].mxu0
    %v229 = vadd.f32 0.0, %v228
    %v230 = vpop.f32.mrb[0].mxu0
    %231 = vdwg.mxu0
    %v232 = vadd.f32 %v139, %v224
    %v233 = vadd.f32 %v140, %v229
    %234 = vst.msk [vmem:[#allocation2] sm:$0xff] %vm47, %v232
    %235 = vst.msk [vmem:[#allocation2 + $0x8] sm:$0xff] %vm47, %v233
    // Predicated region
    $region34: #{tpu_custom_call.1} parent=1 // pred_check
      %p236 = pneg %p27
    $region35: #{tpu_custom_call.1} parent=1 // pred_check_branch
      %238 = sbr.rel (%p236) target = $region37
    $region36: #{tpu_custom_call.1} parent=1 // pred_region
      %v239 = vld [vmem:[%s0] sm:$0xff]
      %v240 = vld [vmem:[%s0 + $0x8] sm:$0xff]
      %v241 = vld [vmem:[#allocation2] sm:$0xff]
      %v242 = vld [vmem:[#allocation2 + $0x8] sm:$0xff]
      %v243 = vld [vmem:[%s4] sm:$0x1]
      %v245 = vlaneseq
      %v246 = vshrl.u32 %v245, 7
      %v247 = vsub.s32 0, %v246
      %v248 = vrot.slane %v243, %v247
      %v250 = vadd.f32 %v241, %v248
      %v251 = vadd.f32 %v242, %v248
      %v252 = vadd.f32 %v250, %v239
      %v253 = vadd.f32 %v251, %v240
      %v254 = vsel %vm47, %v252, 0.0
      %255 = vadd.xlane.f32.xlu0 %v254
      %v256 = vpop.xlane.xlu0 %255
      %v257 = vsel %vm47, %v253, 0.0
      %258 = vadd.xlane.f32.xlu0 %v257
      %v259 = vpop.xlane.xlu0 %258
      %v260 = vrcp.pop 32.0
      %v261 = vmul.f32 %v256, %v260
      %v262 = vmul.f32 %v259, %v260
      %v263 = vsub.f32 %v252, %v261
      %v264 = vsub.f32 %v253, %v262
      %v265 = vmul.f32 %v263, %v263
      %v266 = vmul.f32 %v264, %v264
      %v267 = vsel %vm47, %v265, 0.0
      %268 = vadd.xlane.f32.xlu0 %v267
      %v269 = vpop.xlane.xlu0 %268
      %v270 = vsel %vm47, %v266, 0.0
      %271 = vadd.xlane.f32.xlu0 %v270
      %v272 = vpop.xlane.xlu0 %271
      %v273 = vmul.f32 %v269, %v260
      %v274 = vmul.f32 %v272, %v260
      %v275 = vadd.f32 %v273, 1e-08
      %v276 = vadd.f32 %v274, 1e-08
      %v277 = vrsqrt.pop %v275
      %v278 = vrsqrt.pop %v276
      %v279 = vmul.f32 %v263, %v277
      %v280 = vmul.f32 %v264, %v278
      %v281 = vld [vmem:[%s5] sm:$0x1]
      %v283 = vlaneseq
      %v284 = vshrl.u32 %v283, 7
      %v285 = vsub.s32 0, %v284
      %v286 = vrot.slane %v281, %v285
      %v288 = vmul.f32 %v279, %v286
      %v289 = vmul.f32 %v280, %v286
      %v290 = vld [vmem:[%s6] sm:$0x1]
      %v292 = vlaneseq
      %v293 = vshrl.u32 %v292, 7
      %v294 = vsub.s32 0, %v293
      %v295 = vrot.slane %v290, %v294
      %v297 = vadd.f32 %v288, %v295
      %v298 = vadd.f32 %v289, %v295
      %299 = vst.msk [vmem:[#allocation3] sm:$0xff] %vm47, %v297
      %300 = vst.msk [vmem:[#allocation3 + $0x8] sm:$0xff] %vm47, %v298
    $region37: #{tpu_custom_call.1} parent=1 // pred_fallthru
      _
    // Predicated region
    $region38: #{tpu_custom_call.1} parent=1 // pred_check
      _
    $region39: #{tpu_custom_call.1} parent=1 // pred_check_branch
      %302 = sbr.rel (0) target = $region41
    $region40: #{tpu_custom_call.1} parent=1 // pred_region
      %s304 = ssub.s32 256, 256
      %305 = vsyncadd [#allocation4], %s304
      %s306 = sshll.u32 [#allocation3], 4
      %s307 = int_to_ptr.vmem [resolvable:$true] %s306
      %312 = dma.vmem_to_hbm [thread:$0]  %s307, 256, %s7, [#allocation4], 128, 128, 8
    $region41: #{tpu_custom_call.1} parent=1 // pred_fallthru
      _
    // Predicated region
    $region42: #{tpu_custom_call.1} parent=1 // pred_check
      _
    $region43: #{tpu_custom_call.1} parent=1 // pred_check_branch
      %314 = sbr.rel (0) target = $region45
    $region44: #{tpu_custom_call.1} parent=1 // pred_region
      %315 = dma.done [#allocation4], 256
    $region45: #{tpu_custom_call.1} parent=1 // pred_fallthru
      _
    %316 = vsyncpa [#allocation4], 1

</llo_original>
